<compile_context>
chip_gen: v6e
topology: v6e:2x2x1
jax: 0.10.0
libtpu: 0.0.40
codegen_flags: <defaults>
</compile_context>

<pallas_src>
import functools

import jax
import jax.numpy as jnp
from jax import lax
from jax.experimental import pallas as pl
from jax.experimental.pallas import tpu as pltpu


# --------------------------------- helpers -------------------------------------
def _round_up(x, m):
    return ((x + m - 1) // m) * m


def _pick_tiles(r_needed, wp):
    """Output rows per grid step (TH) and grid size (G).

    Targets ~8K output lanes per step; keeps >=2 (even) steps only for layers
    big enough to amortize the per-step overhead (so tiny layers are not split
    on single-TensorCore chips)."""
    lanes_total = r_needed * wp
    if lanes_total >= 4096:
        g = max(2, 2 * int(round(lanes_total / 16384.0)))
    else:
        g = 1
    g = max(1, min(g, r_needed))
    th = -(-r_needed // g)          # ceil
    g = -(-r_needed // th)
    return th, g


# ----------------------------- Pallas conv-GEMM kernel -------------------------
def _make_conv_kernel(n_taps_h, n_taps_w, wp, lout, k0, act):
    """out(N, LOUT) = sum_taps W_tap(N, K0) @ slab[:, off_tap : off_tap+LOUT]
    + shift, fused activation.  All tap offsets are static lane offsets."""

    def kernel(x_ref, w_ref, s_ref, o_ref):
        acc = None
        t = 0
        for dh in range(n_taps_h):
            for dw in range(n_taps_w):
                off = dh * wp + dw
                a = x_ref[:, off:off + lout]                    # (K0, LOUT)
                wt = w_ref[:, t * k0:(t + 1) * k0]              # (N, K0)
                d = jnp.dot(wt, a, preferred_element_type=jnp.float32)
                acc = d if acc is None else acc + d
                t += 1
        y = acc + s_ref[...]                  # folded BN shift / conv bias
        if act == "relu":
            y = jnp.maximum(y, 0.0)
        elif act == "leaky2":                 # LeakyReLU(0.2)
            y = jnp.where(y > 0.0, y, 0.2 * y)
        elif act == "leaky05":                # LeakyReLU(0.05)
            y = jnp.where(y > 0.0, y, 0.05 * y)
        elif act == "tanh":
            y = jnp.tanh(y)
        # "linear": no activation
        o_ref[...] = y.astype(o_ref.dtype)

    return kernel


def _conv_gemm(planes, w, shift, act, taps, h_out, w_out, out_dtype=jnp.bfloat16):
    """Shared stride-1 "tap conv as GEMM" driver.

    planes : (K0, B, Hp, Wp) bf16 padded planes; output position (r, c) reads
             plane rows r..r+taps_h-1 and cols c..c+taps_w-1.
    w      : (N, n_taps*K0) bf16 GEMM weight, tap-major columns.
    shift  : (N, 1) f32 shift added before the activation.
    Returns (N, B, h_out, w_out) bf16."""
    k0, batch, hp, wp = planes.shape
    th_taps, tw_taps = taps
    n = w.shape[0]
    n_taps = th_taps * tw_taps

    # Real output rows are the first h_out rows of each image's hp-row block.
    r_needed = (batch - 1) * hp + h_out
    th, g = _pick_tiles(r_needed, wp)
    lout = th * wp
    slab = _round_up(lout + (th_taps - 1) * wp + (tw_taps - 1), 128)

    stream = planes.reshape(k0, batch * hp * wp)
    need = (g - 1) * th * wp + slab
    pad = max(0, need - stream.shape[1])
    if pad:
        stream = jnp.pad(stream, ((0, 0), (0, pad)))
    slabs = jnp.stack(
        [stream[:, i * th * wp: i * th * wp + slab] for i in range(g)], axis=0)

    # VMEM bound: double-buffered slab + weight + output, f32 accumulator,
    # tap-slice temporaries; generous floor, well under every chip's VMEM.
    vmem_need = (2 * k0 * slab * 2 + 2 * n * n_taps * k0 * 2 +
                 2 * n * lout * 2 + n * lout * 4 + 2 * k0 * lout * 2 + n * 8)
    vmem_limit = int(min(32 * 1024 * 1024, max(2 * vmem_need, 12 * 1024 * 1024)))

    cost = pl.CostEstimate(
        flops=int(2 * g * n * n_taps * k0 * lout),
        transcendentals=int(g * n * lout) if act == "tanh" else 0,
        bytes_accessed=int(slabs.size * 2 + w.size * 2 + shift.size * 4 +
                           g * n * lout * 2))

    out = pl.pallas_call(
        _make_conv_kernel(th_taps, tw_taps, wp, lout, k0, act),
        out_shape=jax.ShapeDtypeStruct((g, n, lout), out_dtype),
        grid_spec=pltpu.PrefetchScalarGridSpec(
            num_scalar_prefetch=0,
            grid=(g,),
            in_specs=[
                pl.BlockSpec((None, k0, slab), lambda i: (i, 0, 0)),   # slab
                pl.BlockSpec((n, n_taps * k0), lambda i: (0, 0)),      # weight
                pl.BlockSpec((n, 1), lambda i: (0, 0)),                # shift
            ],
            out_specs=pl.BlockSpec((None, n, lout), lambda i: (i, 0, 0)),
        ),
        compiler_params=pltpu.CompilerParams(
            dimension_semantics=("parallel",),
            vmem_limit_bytes=vmem_limit),
        cost_estimate=cost,
    )(slabs, w, shift)

    full = jnp.transpose(out, (1, 0, 2)).reshape(n, g * th, wp)
    y = jnp.stack([full[:, i * hp: i * hp + h_out, :w_out] for i in range(batch)],
                  axis=1)
    return y                                              # (N, B, h_out, w_out)


# --------------------------------- layers --------------------------------------
def _s2d_planes(x):
    """x: (C,B,H,W) -> (4C, B, H/2+1, W/2+1) space-to-depth phase planes with
    the reflect padding of Conv2d(k=4,s=2,p=1,reflect) folded in, so the layer
    becomes a 2x2-tap stride-1 conv on the stacked planes."""
    ev_r = x[:, :, 0::2, :]
    od_r = x[:, :, 1::2, :]
    p0r = jnp.concatenate([ev_r, ev_r[:, :, -1:, :]], axis=2)   # rows x[2r], tail=x[H-2]
    p1r = jnp.concatenate([od_r[:, :, :1, :], od_r], axis=2)    # rows x[2r-1], head=x[1]
    planes = []
    for pr in (p0r, p1r):                                       # phase a = 0, 1
        ev_c = pr[:, :, :, 0::2]
        od_c = pr[:, :, :, 1::2]
        planes.append(jnp.concatenate([ev_c, ev_c[:, :, :, -1:]], axis=3))  # b=0
        planes.append(jnp.concatenate([od_c[:, :, :, :1], od_c], axis=3))   # b=1
    return jnp.concatenate(planes, axis=0)


def conv_down(x, w_gemm, shift, act):
    """Conv2d(k=4,s=2,p=1,reflect) (+ folded BN / bias) + activation."""
    _, b, h, w = x.shape
    planes = _s2d_planes(x)
    return _conv_gemm(planes, w_gemm, shift, act, taps=(2, 2),
                      h_out=h // 2, w_out=w // 2)


def conv_up(x, w_gemm, shift, act):
    """ConvTranspose2d(k=4,s=2,p=1) (+ folded BN / bias) + activation.

    x is the already channel-concatenated input (Cin, B, H, W); the concat is
    absorbed by the slab prep (no separate HBM concat + gather)."""
    _, b, h, w = x.shape
    planes = jnp.pad(x, ((0, 0), (0, 0), (1, 1), (1, 1)))
    yp = _conv_gemm(planes, w_gemm, shift, act, taps=(3, 3),
                    h_out=h, w_out=w)                     # (4*Cout, B, H, W)
    c_out = yp.shape[0] // 4
    yp = yp.reshape(2, 2, c_out, b, h, w)
    # TODO(synk): fold this depth-to-space into the next layer's slab prep.
    return jnp.transpose(yp, (2, 3, 4, 0, 5, 1)).reshape(c_out, b, 2 * h, 2 * w)


# ---------------------------- weight preparation -------------------------------
def _prep_down_weight(w, scale):
    """PyTorch Conv2d weight (Cout, Cin, 4, 4) -> (Cout, 16*Cin) GEMM weight.

    Column order matches _s2d_planes + the 2x2 in-kernel taps:
    tap-major (eh, ew), then phase (a, b), then input channel."""
    c_out, c_in = w.shape[0], w.shape[1]
    w6 = w.reshape(c_out, c_in, 2, 2, 2, 2)        # (co, c, eh, kh%2, ew, kw%2)
    w6 = w6[:, :, :, ::-1, :, ::-1]                # kh%2 -> phase a, kw%2 -> b
    wg = jnp.transpose(w6, (0, 2, 4, 3, 5, 1))     # (co, eh, ew, a, b, c)
    wg = wg.reshape(c_out, 16 * c_in) * scale[:, None]
    return wg.astype(jnp.bfloat16)


def _prep_up_weight(w, scale):
    """ConvTranspose2d weight (Cin, Cout, 4, 4) -> (4*Cout, 9*Cin) GEMM weight.

    Sub-pixel decomposition: output phase (a,b) at block (i,j) receives input
    (i+dh, j+dw) through kernel tap (ky,kx) = (1+a-2dh, 1+b-2dw) when that tap
    lies inside the 4x4 kernel; other (tap, phase) pairs are zero."""
    c_in, c_out = w.shape[0], w.shape[1]
    wk = jnp.zeros((2, 2, c_out, 3, 3, c_in), jnp.float32)
    for a in range(2):
        for b in range(2):
            for dh in (-1, 0, 1):
                ky = 1 + a - 2 * dh
                if not 0 <= ky <= 3:
                    continue
                for dw in (-1, 0, 1):
                    kx = 1 + b - 2 * dw
                    if not 0 <= kx <= 3:
                        continue
                    wk = wk.at[a, b, :, dh + 1, dw + 1, :].set(
                        jnp.transpose(w[:, :, ky, kx], (1, 0)))
    wk = wk * scale[None, None, :, None, None, None]
    return wk.reshape(4 * c_out, 9 * c_in).astype(jnp.bfloat16)


# -------------------------------- parameters -----------------------------------
def init_params(key, in_ch=3, F=8):
    params = {}

    def nxt():
        nonlocal key
        key, k = jax.random.split(key)
        return k

    def conv_bn(name, cin, cout, transposed=False):     # conv (no bias) + BN (eval)
        shape = (cin, cout, 4, 4) if transposed else (cout, cin, 4, 4)
        params[name] = dict(
            w=0.05 * jax.random.normal(nxt(), shape, jnp.float32),
            gamma=1.0 + 0.1 * jax.random.normal(nxt(), (cout,), jnp.float32),
            beta=0.1 * jax.random.normal(nxt(), (cout,), jnp.float32),
            mean=0.05 * jax.random.normal(nxt(), (cout,), jnp.float32),
            var=1.0 + 0.1 * jax.random.uniform(nxt(), (cout,), jnp.float32))

    def conv_bias(name, cin, cout, transposed=False):   # conv with bias, no BN
        shape = (cin, cout, 4, 4) if transposed else (cout, cin, 4, 4)
        params[name] = dict(
            w=0.05 * jax.random.normal(nxt(), shape, jnp.float32),
            bias=0.1 * jax.random.normal(nxt(), (cout,), jnp.float32))

    conv_bias("down1", in_ch, F)
    conv_bn("down2", F, 2 * F)
    conv_bn("down3", 2 * F, 4 * F)
    conv_bn("down4", 4 * F, 8 * F)
    conv_bn("down5", 8 * F, 8 * F)
    conv_bn("down6", 8 * F, 8 * F)
    conv_bn("down7", 8 * F, 8 * F)
    conv_bias("down8", 8 * F, 8 * F)
    conv_bn("up1", 8 * F, 8 * F, transposed=True)
    conv_bn("up2", 16 * F, 8 * F, transposed=True)
    conv_bn("up3", 16 * F, 8 * F, transposed=True)
    conv_bn("up4", 16 * F, 8 * F, transposed=True)
    conv_bn("up5", 16 * F, 4 * F, transposed=True)
    conv_bn("up6", 8 * F, 2 * F, transposed=True)
    conv_bn("up7", 4 * F, F, transposed=True)
    conv_bias("up8", 2 * F, in_ch, transposed=True)
    return params


def prepare_params(params):
    """One-time relayout: fold BN (scale = gamma/sqrt(var+eps),
    shift = beta - scale*mean) or bias into the GEMM weights, bf16 cast."""
    eps = 1e-5
    prepared = {}
    for name, p in params.items():
        if "bias" in p:
            scale = jnp.ones(p["bias"].shape, jnp.float32)
            shift = p["bias"].astype(jnp.float32)
        else:
            scale = p["gamma"] / jnp.sqrt(p["var"] + eps)
            shift = p["beta"] - scale * p["mean"]
        if name.startswith("down"):
            wg = _prep_down_weight(p["w"], scale)
            sh = shift.reshape(-1, 1).astype(jnp.float32)
        else:
            wg = _prep_up_weight(p["w"], scale)
            sh = jnp.tile(shift, 4).reshape(-1, 1).astype(jnp.float32)
        prepared[name] = (wg, sh)
    return prepared


# --------------------------------- forward -------------------------------------
def generator_forward(x_nchw, PP):
    # NCHW f32 -> channels-first (C, B, H, W) bf16
    x = jnp.transpose(x_nchw, (1, 0, 2, 3)).astype(jnp.bfloat16)
    d1 = conv_down(x, *PP["down1"], act="leaky05")
    d2 = conv_down(d1, *PP["down2"], act="leaky2")
    d3 = conv_down(d2, *PP["down3"], act="leaky2")
    d4 = conv_down(d3, *PP["down4"], act="leaky2")
    d5 = conv_down(d4, *PP["down5"], act="leaky2")
    d6 = conv_down(d5, *PP["down6"], act="leaky2")
    d7 = conv_down(d6, *PP["down7"], act="leaky2")
    bott = conv_down(d7, *PP["down8"], act="relu")
    # TODO(synk): Dropout (up1-3) and BatchNorm use eval-mode semantics
    # (dropout = identity, BN folded running stats).
    u1 = conv_up(bott, *PP["up1"], act="relu")
    u2 = conv_up(jnp.concatenate([u1, d7], axis=0), *PP["up2"], act="relu")
    u3 = conv_up(jnp.concatenate([u2, d6], axis=0), *PP["up3"], act="relu")
    u4 = conv_up(jnp.concatenate([u3, d5], axis=0), *PP["up4"], act="relu")
    u5 = conv_up(jnp.concatenate([u4, d4], axis=0), *PP["up5"], act="relu")
    u6 = conv_up(jnp.concatenate([u5, d3], axis=0), *PP["up6"], act="relu")
    u7 = conv_up(jnp.concatenate([u6, d2], axis=0), *PP["up7"], act="relu")
    u8 = conv_up(jnp.concatenate([u7, d1], axis=0), *PP["up8"], act="tanh")
    return jnp.transpose(u8, (1, 0, 2, 3)).astype(jnp.float32)   # -> NCHW f32


# ------------------------------ self correctness -------------------------------
def _self_check(key):
    """Check one down conv and one up (transposed) conv against lax references."""
    k1, k2, k3 = jax.random.split(key, 3)
    B, H, W, Cin, Cout = 2, 8, 8, 8, 16
    x = (0.5 * jax.random.normal(k1, (Cin, B, H, W), jnp.float32)).astype(jnp.bfloat16)
    x_nchw = jnp.transpose(x.astype(jnp.float32), (1, 0, 2, 3))

    # ---- down conv (reflect pad, stride 2) ----
    w = 0.1 * jax.random.normal(k2, (Cout, Cin, 4, 4), jnp.float32)
    got = conv_down(x, _prep_down_weight(w, jnp.ones((Cout,), jnp.float32)),
                    jnp.zeros((Cout, 1), jnp.float32), "linear")
    w_bf = w.astype(jnp.bfloat16).astype(jnp.float32)
    xr = jnp.pad(x_nchw, ((0, 0), (0, 0), (1, 1), (1, 1)), mode="reflect")
    ref = lax.conv_general_dilated(
        xr, w_bf, window_strides=(2, 2), padding="VALID",
        dimension_numbers=("NCHW", "OIHW", "NCHW"))
    ref = jnp.transpose(ref, (1, 0, 2, 3))
    err = jnp.max(jnp.abs(got.astype(jnp.float32) - ref))
    err = float(err / (jnp.max(jnp.abs(ref)) + 1e-6))
    assert err < 8e-2, f"down conv mismatch: rel err {err}"

    # ---- transposed conv (k=4, s=2, p=1) via sub-pixel decomposition ----
    wt = 0.1 * jax.random.normal(k3, (Cin, Cout, 4, 4), jnp.float32)
    got = conv_up(x, _prep_up_weight(wt, jnp.ones((Cout,), jnp.float32)),
                  jnp.zeros((4 * Cout, 1), jnp.float32), "linear")
    wt_bf = wt.astype(jnp.bfloat16).astype(jnp.float32)
    w_flip = jnp.transpose(wt_bf, (1, 0, 2, 3))[:, :, ::-1, ::-1]
    ref = lax.conv_general_dilated(
        x_nchw, w_flip, window_strides=(1, 1), padding=((2, 2), (2, 2)),
        lhs_dilation=(2, 2), dimension_numbers=("NCHW", "OIHW", "NCHW"))
    ref = jnp.transpose(ref, (1, 0, 2, 3))
    err = jnp.max(jnp.abs(got.astype(jnp.float32) - ref))
    err = float(err / (jnp.max(jnp.abs(ref)) + 1e-6))
    assert err < 8e-2, f"transposed conv mismatch: rel err {err}"


if __name__ == "__main__":
    key = jax.random.PRNGKey(0)
    k_x, k_p, k_t = jax.random.split(key, 3)

    IN_CH, F = 3, 8
    # 8 stride-2 downsamples (with padding 1) require spatial >= 256.
    x = jax.random.normal(k_x, (2, IN_CH, 256, 256), jnp.float32)
    params = init_params(k_p, in_ch=IN_CH, F=F)
    PP = prepare_params(params)

    _self_check(k_t)

    fwd = jax.jit(functools.partial(generator_forward, PP=PP))
    y = jax.block_until_ready(fwd(x))

    assert y.shape == (2, IN_CH, 256, 256), y.shape
    assert y.dtype == jnp.float32
    assert bool(jnp.all(jnp.isfinite(y)))
    assert bool(jnp.all(jnp.abs(y) <= 1.0))  # tanh output range
    print("KERNEL_OK")
</pallas_src>

<mosaic_0001>
module attributes {stable_mosaic.version = 11 : i64} {
  func.func @kernel(%arg0: i32, %arg1: memref<1x32x128xbf16, #tpu.memory_space<vmem>>, %arg2: memref<16x128xbf16, #tpu.memory_space<vmem>>, %arg3: memref<16x1xf32, #tpu.memory_space<vmem>>, %arg4: memref<1x16x45xbf16, #tpu.memory_space<vmem>>) attributes {dimension_semantics = [#tpu.dimension_semantics<parallel>], iteration_bounds = array<i64: 1>, scalar_prefetch = 0 : i64, scratch_operands = 0 : i64, tpu.core_type = #tpu.core_type<tc>, window_params = [{transform_indices = @transform_0, window_bounds = array<i64: 1, 32, 128>}, {pipeline_mode = #tpu.pipeline_mode<synchronous>, transform_indices = @transform_1, window_bounds = array<i64: 16, 128>}, {pipeline_mode = #tpu.pipeline_mode<synchronous>, transform_indices = @transform_2, window_bounds = array<i64: 16, 1>}, {transform_indices = @transform_3, window_bounds = array<i64: 1, 16, 45>}]} {
    %c0 = arith.constant 0 : index
    %c0_0 = arith.constant 0 : index
    %c0_1 = arith.constant 0 : index
    %0 = vector.load %arg1[%c0, %c0_0, %c0_1] : memref<1x32x128xbf16, #tpu.memory_space<vmem>>, vector<1x32x45xbf16>
    %1 = vector.shape_cast %0 : vector<1x32x45xbf16> to vector<32x45xbf16>
    %c0_2 = arith.constant 0 : index
    %c0_3 = arith.constant 0 : index
    %2 = vector.load %arg2[%c0_2, %c0_3] : memref<16x128xbf16, #tpu.memory_space<vmem>>, vector<16x32xbf16>
    %cst = arith.constant dense<0.000000e+00> : vector<16x45xf32>
    %3 = tpu.matmul %2, %1, %cst {dimension_numbers = #tpu.dot_dimension_numbers<[1], [0], [0], [1], [0, 0, 1, 1], [], []>} : vector<16x32xbf16>, vector<32x45xbf16>, vector<16x45xf32> -> vector<16x45xf32>
    %c0_4 = arith.constant 0 : index
    %c0_5 = arith.constant 0 : index
    %c1 = arith.constant 1 : index
    %4 = vector.load %arg1[%c0_4, %c0_5, %c1] : memref<1x32x128xbf16, #tpu.memory_space<vmem>>, vector<1x32x45xbf16>
    %5 = vector.shape_cast %4 : vector<1x32x45xbf16> to vector<32x45xbf16>
    %c0_6 = arith.constant 0 : index
    %c32 = arith.constant 32 : index
    %6 = vector.load %arg2[%c0_6, %c32] : memref<16x128xbf16, #tpu.memory_space<vmem>>, vector<16x32xbf16>
    %cst_7 = arith.constant dense<0.000000e+00> : vector<16x45xf32>
    %7 = tpu.matmul %6, %5, %cst_7 {dimension_numbers = #tpu.dot_dimension_numbers<[1], [0], [0], [1], [0, 0, 1, 1], [], []>} : vector<16x32xbf16>, vector<32x45xbf16>, vector<16x45xf32> -> vector<16x45xf32>
    %8 = arith.addf %3, %7 : vector<16x45xf32>
    %c0_8 = arith.constant 0 : index
    %c0_9 = arith.constant 0 : index
    %c5 = arith.constant 5 : index
    %9 = vector.load %arg1[%c0_8, %c0_9, %c5] : memref<1x32x128xbf16, #tpu.memory_space<vmem>>, vector<1x32x45xbf16>
    %10 = vector.shape_cast %9 : vector<1x32x45xbf16> to vector<32x45xbf16>
    %c0_10 = arith.constant 0 : index
    %c64 = arith.constant 64 : index
    %11 = vector.load %arg2[%c0_10, %c64] : memref<16x128xbf16, #tpu.memory_space<vmem>>, vector<16x32xbf16>
    %cst_11 = arith.constant dense<0.000000e+00> : vector<16x45xf32>
    %12 = tpu.matmul %11, %10, %cst_11 {dimension_numbers = #tpu.dot_dimension_numbers<[1], [0], [0], [1], [0, 0, 1, 1], [], []>} : vector<16x32xbf16>, vector<32x45xbf16>, vector<16x45xf32> -> vector<16x45xf32>
    %13 = arith.addf %8, %12 : vector<16x45xf32>
    %c0_12 = arith.constant 0 : index
    %c0_13 = arith.constant 0 : index
    %c6 = arith.constant 6 : index
    %14 = vector.load %arg1[%c0_12, %c0_13, %c6] : memref<1x32x128xbf16, #tpu.memory_space<vmem>>, vector<1x32x45xbf16>
    %15 = vector.shape_cast %14 : vector<1x32x45xbf16> to vector<32x45xbf16>
    %c0_14 = arith.constant 0 : index
    %c96 = arith.constant 96 : index
    %16 = vector.load %arg2[%c0_14, %c96] : memref<16x128xbf16, #tpu.memory_space<vmem>>, vector<16x32xbf16>
    %cst_15 = arith.constant dense<0.000000e+00> : vector<16x45xf32>
    %17 = tpu.matmul %16, %15, %cst_15 {dimension_numbers = #tpu.dot_dimension_numbers<[1], [0], [0], [1], [0, 0, 1, 1], [], []>} : vector<16x32xbf16>, vector<32x45xbf16>, vector<16x45xf32> -> vector<16x45xf32>
    %18 = arith.addf %13, %17 : vector<16x45xf32>
    %c0_16 = arith.constant 0 : index
    %c0_17 = arith.constant 0 : index
    %19 = vector.load %arg3[%c0_16, %c0_17] : memref<16x1xf32, #tpu.memory_space<vmem>>, vector<16x1xf32>
    %20 = vector.broadcast %19 : vector<16x1xf32> to vector<16x45xf32>
    %21 = arith.addf %18, %20 : vector<16x45xf32>
    %22 = arith.truncf %21 : vector<16x45xf32> to vector<16x45xbf16>
    %c0_18 = arith.constant 0 : index
    %c0_19 = arith.constant 0 : index
    %c0_20 = arith.constant 0 : index
    %23 = vector.load %arg4[%c0_18, %c0_19, %c0_20] : memref<1x16x45xbf16, #tpu.memory_space<vmem>>, vector<1x16x45xbf16>
    %24 = vector.shape_cast %23 : vector<1x16x45xbf16> to vector<16x45xbf16>
    %25 = vector.shape_cast %22 : vector<16x45xbf16> to vector<1x16x45xbf16>
    tpu.vector_store %arg4[%c0_18, %c0_19, %c0_20], %25 {strides = array<i32>} : memref<1x16x45xbf16, #tpu.memory_space<vmem>>, vector<1x16x45xbf16>,
    return
  }
  func.func @transform_0(%arg0: i32) -> (i32, i32, i32) {
    %c0_i32 = arith.constant 0 : i32
    %c0_i32_0 = arith.constant 0 : i32
    %c0_i32_1 = arith.constant 0 : i32
    return %arg0, %c0_i32, %c0_i32_0 : i32, i32, i32
  }
  func.func @transform_1(%arg0: i32) -> (i32, i32) {
    %c0_i32 = arith.constant 0 : i32
    %c0_i32_0 = arith.constant 0 : i32
    %c0_i32_1 = arith.constant 0 : i32
    return %c0_i32, %c0_i32_0 : i32, i32
  }
  func.func @transform_2(%arg0: i32) -> (i32, i32) {
    %c0_i32 = arith.constant 0 : i32
    %c0_i32_0 = arith.constant 0 : i32
    %c0_i32_1 = arith.constant 0 : i32
    return %c0_i32, %c0_i32_0 : i32, i32
  }
  func.func @transform_3(%arg0: i32) -> (i32, i32, i32) {
    %c0_i32 = arith.constant 0 : i32
    %c0_i32_0 = arith.constant 0 : i32
    %c0_i32_1 = arith.constant 0 : i32
    return %arg0, %c0_i32, %c0_i32_0 : i32, i32, i32
  }
}

</mosaic_0001>

<llo_original>
// kernel: tpu_custom_call.1
$region0: #{tpu_custom_call.1}
  #allocation0 [shape = 'u32[]', space=smem, size = 0x4, offset = 0x4, fixed_abs, tag = 'smem constant byte address 0x4 - core index']
  #allocation1 [shape = 'u32[144,128]{1,0:T(1,128)}', space=vmem, size = 0x12000, scoped, tag = 'internal scratch']
  %s0 = inlined_call_operand.vmem [shape: bf16[1,32,128], index: 0, kind: input, shape index: {}]
  %s1 = inlined_call_operand.hbm [shape: bf16[16,128], index: 1, kind: input, shape index: {}]
  %s2 = inlined_call_operand.vmem [shape: f32[16,1], index: 2, kind: input, shape index: {}]
  %s3 = inlined_call_operand.hbm [shape: bf16[1,16,45], index: 3, kind: output, shape index: {}]
  %s4 = sld [smem:[#allocation0]]
  $region26: #{tpu_custom_call.1} parent=0
    _
  %s6 = ssub.s32 1, %s4
  %s7 = scalar_select 0, %s6, %s4
  $region1: #{tpu_custom_call.1} parent=0
    #allocation2 [shape = 'u8[4096]{0}', space=vmem, size = 0x1000, scoped, tag = 'input window, operand 1, single buffered']
    #allocation3 [shape = 's32[1]{0}', space=sflag, size = 0x4, scoped, tag = 'scoped memory for tpu_custom_call.1']
    #allocation4 [shape = 's32[1]{0}', space=sflag, size = 0x4, scoped, tag = 'scoped memory for tpu_custom_call.1']
    #allocation5 [shape = 'u8[4096]{0}', space=vmem, size = 0x1000, scoped, tag = 'output window, operand 0, single buffered']
    %8 = vsyncpa [#allocation3], 0
    %9 = vsyncpa [#allocation4], 0
    // Predicated region
    $region2: #{tpu_custom_call.1} parent=1 // pred_check
      _
    $region3: #{tpu_custom_call.1} parent=1 // pred_check_branch
      %11 = sbr.rel (0) target = $region5
    $region4: #{tpu_custom_call.1} parent=1 // pred_region
      _
    $region5: #{tpu_custom_call.1} parent=1 // pred_fallthru
      _
    // Predicated region
    $region6: #{tpu_custom_call.1} parent=1 // pred_check
      _
    $region7: #{tpu_custom_call.1} parent=1 // pred_check_branch
      %13 = sbr.rel (0) target = $region9
    $region8: #{tpu_custom_call.1} parent=1 // pred_region
      %s15 = ssub.s32 128, 128
      %16 = vsyncadd [#allocation3], %s15
      %s17 = sshll.u32 [#allocation2], 4
      %s18 = int_to_ptr.vmem [resolvable:$true] %s17
      %23 = dma.hbm_to_vmem [thread:$0]  %s1, 128, %s18, [#allocation3], 64, 64, 4
    $region9: #{tpu_custom_call.1} parent=1 // pred_fallthru
      _
    // Predicated region
    $region10: #{tpu_custom_call.1} parent=1 // pred_check
      _
    $region11: #{tpu_custom_call.1} parent=1 // pred_check_branch
      %25 = sbr.rel (0) target = $region13
    $region12: #{tpu_custom_call.1} parent=1 // pred_region
      _
    $region13: #{tpu_custom_call.1} parent=1 // pred_fallthru
      _
    // Predicated region
    $region14: #{tpu_custom_call.1} parent=1 // pred_check
      _
    $region15: #{tpu_custom_call.1} parent=1 // pred_check_branch
      %27 = sbr.rel (0) target = $region17
    $region16: #{tpu_custom_call.1} parent=1 // pred_region
      %28 = dma.done [#allocation3], 128
    $region17: #{tpu_custom_call.1} parent=1 // pred_fallthru
      _
    %v30 = vld [vmem:[%s0] sm:$0xf]
    %v31 = vld [vmem:[%s0 + $0x4] sm:$0xf]
    %v32 = vld [vmem:[%s0 + $0x8] sm:$0xf]
    %v33 = vld [vmem:[%s0 + $0xc] sm:$0xf]
    %v34 = vld [vmem:[#allocation2] sm:$0xf]
    %v35 = vld [vmem:[#allocation2 + $0x4] sm:$0xf]
    %v38 = vunpack.c.l.b16 %v34
    %v39 = vunpack.c.l.b16 %v35
    %v40 = vpack.c.b16 %v39, %v38
    %41 = vrot.lane.b32.xlu0 %v40, 96
    %v42 = vpop.permute.xlu0 %41
    %v47 = vunpack.c.l.b16 %v30
    %v48 = vunpack.c.l.b16 %v31
    %v49 = vunpack.c.l.b16 %v32
    %v50 = vunpack.c.l.b16 %v33
    %v51 = vpack.c.b16 %v48, %v47
    %v52 = vpack.c.b16 %v50, %v49
    %53 = vrot.lane.b32.xlu0 %v51, 127
    %v54 = vpop.permute.xlu0 %53
    %55 = vrot.lane.b32.xlu0 %v52, 127
    %v56 = vpop.permute.xlu0 %55
    %vm59 = vcmask 261120
    %v61 = vsel %vm59, %v42, 0
    %63 = vmatprep.subr.bf16.mxu0 0
    %64 = vmatpush1.bf16.msra.mxu0 0
    %65 = vmatprep.subr.bf16.mxu0 0
    %66 = vmatpush1.bf16.msra.mxu0 0
    %67 = vmatprep.subr.bf16.mxu0 0
    %68 = vmatpush1.bf16.msra.mxu0 0
    %69 = vmatprep.subr.bf16.mxu0 0
    %70 = vmatpush1.bf16.msra.mxu0 0
    %71 = vmatprep.subr.bf16.mxu0 0
    %72 = vmatpush1.bf16.msra.mxu0 0
    %73 = vmatprep.subr.bf16.mxu0 0
    %74 = vmatpush1.bf16.msra.mxu0 0
    %75 = vmatprep.subr.bf16.mxu0 0
    %76 = vmatpush1.bf16.msra.mxu0 %v56
    %77 = vmatprep.subr.bf16.mxu0 0
    %78 = vmatpush1.bf16.msra.mxu0 %v54
    %79 = vmatprep.subr.bf16.mxu0 0
    %80 = vmatpush2.bf16.msra.mxu0 0
    %81 = vmatprep.subr.bf16.mxu0 0
    %82 = vmatpush2.bf16.msra.mxu0 0
    %83 = vmatprep.subr.bf16.mxu0 0
    %84 = vmatpush2.bf16.msra.mxu0 0
    %85 = vmatprep.subr.bf16.mxu0 0
    %86 = vmatpush2.bf16.msra.mxu0 0
    %87 = vmatprep.subr.bf16.mxu0 0
    %88 = vmatpush2.bf16.msra.mxu0 0
    %89 = vmatprep.subr.bf16.mxu0 0
    %90 = vmatpush2.bf16.msra.mxu0 0
    %91 = vmatprep.subr.bf16.mxu0 0
    %92 = vmatpush2.bf16.msra.mxu0 0
    %93 = vmatprep.subr.bf16.mxu0 0
    %94 = vmatpush2.bf16.msra.mxu0 0
    %95 = vmatprep.mubr.bf16.mxu0 0
    %96 = vmatmul.mubr.bf16.gmra.mxu0 %v61
    %v97 = vpop.f32.mrf.mxu0
    %v98 = vadd.f32 0.0, %v97
    %v99 = vpop.f32.mrf.mxu0
    %v100 = vpop.f32.mrf.mxu0
    %v101 = vadd.f32 0.0, %v100
    %v102 = vpop.f32.mrf.mxu0
    %103 = vdwg.mxu0
    %v107 = vsel %vm59, %v40, 0
    %109 = vmatprep.subr.bf16.mxu0 0
    %110 = vmatpush1.bf16.msra.mxu0 0
    %111 = vmatprep.subr.bf16.mxu0 0
    %112 = vmatpush1.bf16.msra.mxu0 0
    %113 = vmatprep.subr.bf16.mxu0 0
    %114 = vmatpush1.bf16.msra.mxu0 0
    %115 = vmatprep.subr.bf16.mxu0 0
    %116 = vmatpush1.bf16.msra.mxu0 0
    %117 = vmatprep.subr.bf16.mxu0 0
    %118 = vmatpush1.bf16.msra.mxu0 0
    %119 = vmatprep.subr.bf16.mxu0 0
    %120 = vmatpush1.bf16.msra.mxu0 0
    %121 = vmatprep.subr.bf16.mxu0 0
    %122 = vmatpush1.bf16.msra.mxu0 %v52
    %123 = vmatprep.subr.bf16.mxu0 0
    %124 = vmatpush1.bf16.msra.mxu0 %v51
    %125 = vmatprep.subr.bf16.mxu0 0
    %126 = vmatpush2.bf16.msra.mxu0 0
    %127 = vmatprep.subr.bf16.mxu0 0
    %128 = vmatpush2.bf16.msra.mxu0 0
    %129 = vmatprep.subr.bf16.mxu0 0
    %130 = vmatpush2.bf16.msra.mxu0 0
    %131 = vmatprep.subr.bf16.mxu0 0
    %132 = vmatpush2.bf16.msra.mxu0 0
    %133 = vmatprep.subr.bf16.mxu0 0
    %134 = vmatpush2.bf16.msra.mxu0 0
    %135 = vmatprep.subr.bf16.mxu0 0
    %136 = vmatpush2.bf16.msra.mxu0 0
    %137 = vmatprep.subr.bf16.mxu0 0
    %138 = vmatpush2.bf16.msra.mxu0 0
    %139 = vmatprep.subr.bf16.mxu0 0
    %140 = vmatpush2.bf16.msra.mxu0 0
    %141 = vmatprep.mubr.bf16.mxu0 0
    %142 = vmatmul.mubr.bf16.gmra.mxu0 %v107
    %v143 = vpop.f32.mrf.mxu0
    %v144 = vadd.f32 %v98, %v143
    %v145 = vpop.f32.mrf.mxu0
    %v146 = vpop.f32.mrf.mxu0
    %v147 = vadd.f32 %v101, %v146
    %v148 = vpop.f32.mrf.mxu0
    %149 = vdwg.mxu0
    %150 = vrot.lane.b32.xlu0 %v40, 64
    %v151 = vpop.permute.xlu0 %150
    %152 = vrot.lane.b32.xlu0 %v51, 123
    %v153 = vpop.permute.xlu0 %152
    %154 = vrot.lane.b32.xlu0 %v52, 123
    %v155 = vpop.permute.xlu0 %154
    %v159 = vsel %vm59, %v151, 0
    %161 = vmatprep.subr.bf16.mxu0 0
    %162 = vmatpush1.bf16.msra.mxu0 0
    %163 = vmatprep.subr.bf16.mxu0 0
    %164 = vmatpush1.bf16.msra.mxu0 0
    %165 = vmatprep.subr.bf16.mxu0 0
    %166 = vmatpush1.bf16.msra.mxu0 0
    %167 = vmatprep.subr.bf16.mxu0 0
    %168 = vmatpush1.bf16.msra.mxu0 0
    %169 = vmatprep.subr.bf16.mxu0 0
    %170 = vmatpush1.bf16.msra.mxu0 0
    %171 = vmatprep.subr.bf16.mxu0 0
    %172 = vmatpush1.bf16.msra.mxu0 0
    %173 = vmatprep.subr.bf16.mxu0 0
    %174 = vmatpush1.bf16.msra.mxu0 %v155
    %175 = vmatprep.subr.bf16.mxu0 0
    %176 = vmatpush1.bf16.msra.mxu0 %v153
    %177 = vmatprep.subr.bf16.mxu0 0
    %178 = vmatpush2.bf16.msra.mxu0 0
    %179 = vmatprep.subr.bf16.mxu0 0
    %180 = vmatpush2.bf16.msra.mxu0 0
    %181 = vmatprep.subr.bf16.mxu0 0
    %182 = vmatpush2.bf16.msra.mxu0 0
    %183 = vmatprep.subr.bf16.mxu0 0
    %184 = vmatpush2.bf16.msra.mxu0 0
    %185 = vmatprep.subr.bf16.mxu0 0
    %186 = vmatpush2.bf16.msra.mxu0 0
    %187 = vmatprep.subr.bf16.mxu0 0
    %188 = vmatpush2.bf16.msra.mxu0 0
    %189 = vmatprep.subr.bf16.mxu0 0
    %190 = vmatpush2.bf16.msra.mxu0 0
    %191 = vmatprep.subr.bf16.mxu0 0
    %192 = vmatpush2.bf16.msra.mxu0 0
    %193 = vmatprep.mubr.bf16.mxu0 0
    %194 = vmatmul.mubr.bf16.gmra.mxu0 %v159
    %v195 = vpop.f32.mrf.mxu0
    %v196 = vadd.f32 0.0, %v195
    %v197 = vpop.f32.mrf.mxu0
    %v198 = vpop.f32.mrf.mxu0
    %v199 = vadd.f32 0.0, %v198
    %v200 = vpop.f32.mrf.mxu0
    %201 = vdwg.mxu0
    %v202 = vadd.f32 %v144, %v196
    %v203 = vadd.f32 %v147, %v199
    %204 = vrot.lane.b32.xlu0 %v40, 32
    %v205 = vpop.permute.xlu0 %204
    %206 = vrot.lane.b32.xlu0 %v51, 122
    %v207 = vpop.permute.xlu0 %206
    %208 = vrot.lane.b32.xlu0 %v52, 122
    %v209 = vpop.permute.xlu0 %208
    %v213 = vsel %vm59, %v205, 0
    %215 = vmatprep.subr.bf16.mxu0 0
    %216 = vmatpush1.bf16.msra.mxu0 0
    %217 = vmatprep.subr.bf16.mxu0 0
    %218 = vmatpush1.bf16.msra.mxu0 0
    %219 = vmatprep.subr.bf16.mxu0 0
    %220 = vmatpush1.bf16.msra.mxu0 0
    %221 = vmatprep.subr.bf16.mxu0 0
    %222 = vmatpush1.bf16.msra.mxu0 0
    %223 = vmatprep.subr.bf16.mxu0 0
    %224 = vmatpush1.bf16.msra.mxu0 0
    %225 = vmatprep.subr.bf16.mxu0 0
    %226 = vmatpush1.bf16.msra.mxu0 0
    %227 = vmatprep.subr.bf16.mxu0 0
    %228 = vmatpush1.bf16.msra.mxu0 %v209
    %229 = vmatprep.subr.bf16.mxu0 0
    %230 = vmatpush1.bf16.msra.mxu0 %v207
    %231 = vmatprep.subr.bf16.mxu0 0
    %232 = vmatpush2.bf16.msra.mxu0 0
    %233 = vmatprep.subr.bf16.mxu0 0
    %234 = vmatpush2.bf16.msra.mxu0 0
    %235 = vmatprep.subr.bf16.mxu0 0
    %236 = vmatpush2.bf16.msra.mxu0 0
    %237 = vmatprep.subr.bf16.mxu0 0
    %238 = vmatpush2.bf16.msra.mxu0 0
    %239 = vmatprep.subr.bf16.mxu0 0
    %240 = vmatpush2.bf16.msra.mxu0 0
    %241 = vmatprep.subr.bf16.mxu0 0
    %242 = vmatpush2.bf16.msra.mxu0 0
    %243 = vmatprep.subr.bf16.mxu0 0
    %244 = vmatpush2.bf16.msra.mxu0 0
    %245 = vmatprep.subr.bf16.mxu0 0
    %246 = vmatpush2.bf16.msra.mxu0 0
    %247 = vmatprep.mubr.bf16.mxu0 0
    %248 = vmatmul.mubr.bf16.gmra.mxu0 %v213
    %v249 = vpop.f32.mrf.mxu0
    %v250 = vadd.f32 0.0, %v249
    %v251 = vpop.f32.mrf.mxu0
    %v252 = vpop.f32.mrf.mxu0
    %v253 = vadd.f32 0.0, %v252
    %v254 = vpop.f32.mrf.mxu0
    %255 = vdwg.mxu0
    %v256 = vadd.f32 %v202, %v250
    %v257 = vadd.f32 %v203, %v253
    %v258 = vld [vmem:[%s2] sm:$0xff]
    %v259 = vld [vmem:[%s2 + $0x8] sm:$0xff]
    %261 = vset.pattern.permute.xlu0 0
    %262 = vperm.xlu0 %261, %v258
    %v263 = vpop.permute.xlu0 %262
    %266 = vset.pattern.permute.xlu0 0
    %267 = vperm.xlu0 %266, %v259
    %v268 = vpop.permute.xlu0 %267
    %v270 = vadd.f32 %v256, %v263
    %v271 = vadd.f32 %v257, %v268
    %v272 = vpack.c.bf16 %v271, %v270
    %v274 = vunpack.c.l.b16 %v272
    %v275 = vunpack.c.h.b16 %v272
    %v276 = vpack.c.b16 %v274, %v274
    %v277 = vpack.c.b16 %v275, %v275
    %vm280 = vcmask 363520
    %281 = vst.msk [vmem:[#allocation5] sm:$0xf] %vm280, %v276
    %282 = vst.msk [vmem:[#allocation5 + $0x4] sm:$0xf] %vm280, %v277
    // Predicated region
    $region18: #{tpu_custom_call.1} parent=1 // pred_check
      _
    $region19: #{tpu_custom_call.1} parent=1 // pred_check_branch
      %284 = sbr.rel (0) target = $region21
    $region20: #{tpu_custom_call.1} parent=1 // pred_region
      %s286 = ssub.s32 128, 128
      %287 = vsyncadd [#allocation4], %s286
      %s288 = sshll.u32 [#allocation5], 4
      %s289 = int_to_ptr.vmem [resolvable:$true] %s288
      %294 = dma.vmem_to_hbm [thread:$0]  %s289, 128, %s3, [#allocation4], 64, 64, 4
    $region21: #{tpu_custom_call.1} parent=1 // pred_fallthru
      _
    // Predicated region
    $region22: #{tpu_custom_call.1} parent=1 // pred_check
      _
    $region23: #{tpu_custom_call.1} parent=1 // pred_check_branch
      %296 = sbr.rel (0) target = $region25
    $region24: #{tpu_custom_call.1} parent=1 // pred_region
      %297 = dma.done [#allocation4], 128
    $region25: #{tpu_custom_call.1} parent=1 // pred_fallthru
      _
    %298 = vsyncpa [#allocation3], 1
    %299 = vsyncpa [#allocation4], 1

</llo_original>
